<compile_context>
chip_gen: v7x
topology: tpu7x:2x2x1
jax: 0.10.0
libtpu: 0.0.40
codegen_flags: <defaults>
</compile_context>

<pallas_src>
import jax
import jax.numpy as jnp
from jax.experimental import pallas as pl
from jax.experimental.pallas import tpu as pltpu


# Conservative double-buffered block budget: v7x has only 64 MiB physical VMEM per TensorCore.
_BLOCK_BUDGET_BYTES = 36 << 20
_VMEM_LIMIT_CAP = 48 << 20


def _vmem_limit(need_bytes):
    """Scoped-VMEM request: scale with block footprint, cap below v7x physical VMEM."""
    return int(min(max(need_bytes * 3 // 2 + (4 << 20), 16 << 20), _VMEM_LIMIT_CAP))


# ----------------------------- kernels ---------------------------------------


def _matmul_kernel(x_ref, p_ref, o_ref):
    # Full-K contraction for this output tile: single MXU dot, f32 accumulation.
    o_ref[...] = jnp.dot(
        x_ref[...], p_ref[...], preferred_element_type=jnp.float32
    ).astype(o_ref.dtype)


def _matmul_acc_kernel(x_ref, p_ref, o_ref, acc_ref):
    # (tm, tn) output tile accumulated over the K grid axis in an f32 VMEM scratch.
    k = pl.program_id(2)

    @pl.when(k == 0)
    def _():
        acc_ref[...] = jnp.zeros_like(acc_ref)

    acc_ref[...] += jnp.dot(
        x_ref[...], p_ref[...], preferred_element_type=jnp.float32
    )

    @pl.when(k == pl.num_programs(2) - 1)
    def _():
        o_ref[...] = acc_ref[...].astype(o_ref.dtype)


# ----------------------------- launchers -------------------------------------


def _launch_resident(x2, p, out_dtype, tm):
    M, K = x2.shape
    _, N = p.shape
    ix = jnp.dtype(x2.dtype).itemsize
    ip = jnp.dtype(p.dtype).itemsize
    need = 2 * tm * (K + N) * ix + 2 * K * N * ip
    return pl.pallas_call(
        _matmul_kernel,
        out_shape=jax.ShapeDtypeStruct((M, N), out_dtype),
        grid_spec=pltpu.PrefetchScalarGridSpec(
            num_scalar_prefetch=0,
            grid=(pl.cdiv(M, tm),),
            in_specs=[
                pl.BlockSpec((tm, K), lambda i: (i, 0)),
                # Constant index map: P is DMA'd once and stays resident in VMEM.
                pl.BlockSpec((K, N), lambda i: (0, 0)),
            ],
            out_specs=pl.BlockSpec((tm, N), lambda i: (i, 0)),
        ),
        compiler_params=pltpu.CompilerParams(
            dimension_semantics=("parallel",),
            vmem_limit_bytes=_vmem_limit(need),
        ),
    )(x2, p)


def _launch_2d(x2, p, out_dtype, tm, tn):
    M, K = x2.shape
    _, N = p.shape
    ix = jnp.dtype(x2.dtype).itemsize
    ip = jnp.dtype(p.dtype).itemsize
    need = 2 * (tm * K * ix + K * tn * ip + tm * tn * ix)
    return pl.pallas_call(
        _matmul_kernel,
        out_shape=jax.ShapeDtypeStruct((M, N), out_dtype),
        grid_spec=pltpu.PrefetchScalarGridSpec(
            num_scalar_prefetch=0,
            grid=(pl.cdiv(M, tm), pl.cdiv(N, tn)),
            in_specs=[
                # x block index is constant along the inner N axis -> not re-fetched per j.
                pl.BlockSpec((tm, K), lambda i, j: (i, 0)),
                pl.BlockSpec((K, tn), lambda i, j: (0, j)),
            ],
            out_specs=pl.BlockSpec((tm, tn), lambda i, j: (i, j)),
        ),
        compiler_params=pltpu.CompilerParams(
            dimension_semantics=("parallel", "parallel"),
            vmem_limit_bytes=_vmem_limit(need),
        ),
    )(x2, p)


def _launch_tiled(x2, p, out_dtype, tm, tn, tk):
    M, K = x2.shape
    _, N = p.shape
    ix = jnp.dtype(x2.dtype).itemsize
    ip = jnp.dtype(p.dtype).itemsize

    # Zero-pad K so the out-of-bounds remainder of the contraction axis can never
    # contaminate valid outputs (M/N remainders are handled by Pallas write masking).
    if K % tk != 0:
        pad = tk - (K % tk)
        x2 = jnp.pad(x2, ((0, 0), (0, pad)))
        p = jnp.pad(p, ((0, pad), (0, 0)))
        K += pad

    need = 2 * (tm * tk * ix + tk * tn * ip + tm * tn * ix) + tm * tn * 4
    return pl.pallas_call(
        _matmul_acc_kernel,
        out_shape=jax.ShapeDtypeStruct((M, N), out_dtype),
        grid_spec=pltpu.PrefetchScalarGridSpec(
            num_scalar_prefetch=0,
            grid=(pl.cdiv(M, tm), pl.cdiv(N, tn), K // tk),
            in_specs=[
                pl.BlockSpec((tm, tk), lambda i, j, k: (i, k)),
                pl.BlockSpec((tk, tn), lambda i, j, k: (k, j)),
            ],
            out_specs=pl.BlockSpec((tm, tn), lambda i, j, k: (i, j)),
            scratch_shapes=[pltpu.VMEM((tm, tn), jnp.float32)],
        ),
        compiler_params=pltpu.CompilerParams(
            dimension_semantics=("parallel", "parallel", "arbitrary"),
            vmem_limit_bytes=_vmem_limit(need),
        ),
    )(x2, p)


# ----------------------------- public wrapper ---------------------------------


def _pick_tm_resident(M, K, N, ix, ip):
    p_bytes = 2 * K * N * ip

    def fits(t):
        return p_bytes + 2 * t * (K + N) * ix <= _BLOCK_BUDGET_BYTES

    if M <= 1024 and fits(M):
        return M
    for t in (1024, 512, 256, 128, 64, 32, 16, 8):
        if t <= M and fits(t):
            return t
    return None


def custom_linear(x, p, *, force_path=None, tile_m=None, tile_n=None, tile_k=None):
    """y = x @ p  (bias-free linear, matching CustomLinear.forward).

    x: (..., in_features)   p: (in_features, out_features)  ->  (..., out_features)
    force_path: None (auto) | "resident" | "2d" | "tiled".
    """
    *lead, K = x.shape
    Kp, N = p.shape
    assert K == Kp, f"in_features mismatch: x has {K}, existing_parameter has {Kp}"

    x2 = x.reshape(-1, K)
    M = x2.shape[0]
    out_dtype = x.dtype
    ix = jnp.dtype(x2.dtype).itemsize
    ip = jnp.dtype(p.dtype).itemsize

    # Default (layout-legal) tile sizes for the streaming paths.
    tm_d = tile_m if tile_m is not None else (M if M <= 256 else 256)
    tn_d = tile_n if tile_n is not None else (N if N <= 512 else 512)
    tk_d = tile_k if tile_k is not None else (K if K <= 1024 else 512)

    tm_res = _pick_tm_resident(M, K, N, ix, ip)

    path = force_path
    if path is None:
        if tile_m is None and tile_n is None and tile_k is None and tm_res is not None:
            path = "resident"
        elif (tile_k is None
              and 2 * (tm_d * K * ix + K * tn_d * ip + tm_d * tn_d * ix)
              <= _BLOCK_BUDGET_BYTES):
            path = "2d"
        else:
            path = "tiled"

    if path == "resident":
        tm = tile_m if tile_m is not None else (tm_res if tm_res is not None else tm_d)
        out = _launch_resident(x2, p, out_dtype, tm)
    elif path == "2d":
        out = _launch_2d(x2, p, out_dtype, tm_d, tn_d)
    else:
        out = _launch_tiled(x2, p, out_dtype, tm_d, tn_d, tk_d)

    return out.reshape(*lead, N)


if __name__ == "__main__":
    k0, k1, k2, k3 = jax.random.split(jax.random.PRNGKey(0), 4)

    # existing_parameter: (in_features, out_features) = (32, 256); batch = 16.
    in_features, out_features, batch = 32, 256, 16
    existing_parameter = jax.random.normal(k0, (in_features, out_features), jnp.float32)
    x = jax.random.normal(k1, (batch, in_features), jnp.float32)

    # Path A: P resident in VMEM, single grid step.
    y = custom_linear(x, existing_parameter)
    jax.block_until_ready(y)
    y_ref = x @ existing_parameter
    assert y.shape == (batch, out_features)
    assert jnp.allclose(y, y_ref, atol=1e-5, rtol=1e-5)

    # Path A2: full-K, P streamed over lane-dense N tiles, no accumulator scratch.
    x32 = jax.random.normal(k2, (48, 160), jnp.float32)
    p32 = jax.random.normal(k3, (160, 384), jnp.float32)
    y2 = custom_linear(x32, p32, force_path="2d", tile_n=128)
    jax.block_until_ready(y2)
    assert jnp.allclose(y2, x32 @ p32, atol=1e-4, rtol=1e-4)

    # Path B: K-tiled accumulator path (forced tiling, K padding, masked M remainder,
    # bf16 inputs with f32 MXU accumulation).
    xb = x32.astype(jnp.bfloat16)
    pb = p32.astype(jnp.bfloat16)
    yb = custom_linear(xb, pb, force_path="tiled", tile_m=32, tile_n=128, tile_k=128)
    jax.block_until_ready(yb)
    yb_ref = jnp.dot(xb.astype(jnp.float32), pb.astype(jnp.float32)).astype(jnp.bfloat16)
    assert yb.shape == (48, 384)
    assert jnp.allclose(
        yb.astype(jnp.float32), yb_ref.astype(jnp.float32), atol=1e-1, rtol=1e-1
    )

    print("KERNEL_OK")
</pallas_src>

<mosaic_0001>
module attributes {stable_mosaic.version = 11 : i64} {
  func.func @_matmul_kernel(%arg0: i32, %arg1: memref<16x32xf32, #tpu.memory_space<vmem>>, %arg2: memref<32x256xf32, #tpu.memory_space<vmem>>, %arg3: memref<16x256xf32, #tpu.memory_space<vmem>>) attributes {dimension_semantics = [#tpu.dimension_semantics<parallel>], iteration_bounds = array<i64: 1>, scalar_prefetch = 0 : i64, scratch_operands = 0 : i64, tpu.core_type = #tpu.core_type<tc>, window_params = [{transform_indices = @transform_0, window_bounds = array<i64: 16, 32>}, {pipeline_mode = #tpu.pipeline_mode<synchronous>, transform_indices = @transform_1, window_bounds = array<i64: 32, 256>}, {transform_indices = @transform_2, window_bounds = array<i64: 16, 256>}]} {
    %c0 = arith.constant 0 : index
    %c0_0 = arith.constant 0 : index
    %0 = vector.load %arg1[%c0, %c0_0] : memref<16x32xf32, #tpu.memory_space<vmem>>, vector<16x32xf32>
    %c0_1 = arith.constant 0 : index
    %c0_2 = arith.constant 0 : index
    %1 = vector.load %arg2[%c0_1, %c0_2] : memref<32x256xf32, #tpu.memory_space<vmem>>, vector<32x256xf32>
    %cst = arith.constant dense<0.000000e+00> : vector<16x256xf32>
    %2 = tpu.matmul %0, %1, %cst {dimension_numbers = #tpu.dot_dimension_numbers<[1], [0], [0], [1], [0, 0, 1, 1], [], []>} : vector<16x32xf32>, vector<32x256xf32>, vector<16x256xf32> -> vector<16x256xf32>
    %c0_3 = arith.constant 0 : index
    %c0_4 = arith.constant 0 : index
    %3 = vector.load %arg3[%c0_3, %c0_4] : memref<16x256xf32, #tpu.memory_space<vmem>>, vector<16x256xf32>
    tpu.vector_store %arg3[%c0_3, %c0_4], %2 {strides = array<i32>} : memref<16x256xf32, #tpu.memory_space<vmem>>, vector<16x256xf32>,
    return
  }
  func.func @transform_0(%arg0: i32) -> (i32, i32) {
    %c0_i32 = arith.constant 0 : i32
    %c0_i32_0 = arith.constant 0 : i32
    return %arg0, %c0_i32 : i32, i32
  }
  func.func @transform_1(%arg0: i32) -> (i32, i32) {
    %c0_i32 = arith.constant 0 : i32
    %c0_i32_0 = arith.constant 0 : i32
    %c0_i32_1 = arith.constant 0 : i32
    return %c0_i32, %c0_i32_0 : i32, i32
  }
  func.func @transform_2(%arg0: i32) -> (i32, i32) {
    %c0_i32 = arith.constant 0 : i32
    %c0_i32_0 = arith.constant 0 : i32
    return %arg0, %c0_i32 : i32, i32
  }
}

</mosaic_0001>

<llo_original>
// kernel: tpu_custom_call.1
$region0: #{tpu_custom_call.1}
  #allocation0 [shape = 'u32[]', space=smem, size = 0x4, offset = 0x4, fixed_abs, tag = 'smem constant byte address 0x4 - core index']
  #allocation1 [shape = 'u32[144,128]{1,0:T(1,128)}', space=vmem, size = 0x12000, scoped, tag = 'internal scratch']
  %s0 = inlined_call_operand.hbm [shape: f32[16,32], index: 0, kind: input, shape index: {}]
  %s1 = inlined_call_operand.hbm [shape: f32[32,256], index: 1, kind: input, shape index: {}]
  %s2 = inlined_call_operand.hbm [shape: f32[16,256], index: 2, kind: output, shape index: {}]
  %s3 = sld [smem:[#allocation0]]
  $region26: #{tpu_custom_call.1} parent=0
    _
  %s5 = ssub.s32 1, %s3
  %s6 = scalar_select 0, %s5, %s3
  $region1: #{tpu_custom_call.1} parent=0
    #allocation2 [shape = 'u8[8192]{0}', space=vmem, size = 0x2000, scoped, tag = 'input window, operand 0, single buffered']
    #allocation3 [shape = 's32[1]{0}', space=sflag, size = 0x4, scoped, tag = 'scoped memory for tpu_custom_call.1']
    #allocation4 [shape = 's32[1]{0}', space=sflag, size = 0x4, scoped, tag = 'scoped memory for tpu_custom_call.1']
    #allocation5 [shape = 'u8[32768]{0}', space=vmem, size = 0x8000, scoped, tag = 'input window, operand 1, single buffered']
    #allocation6 [shape = 's32[1]{0}', space=sflag, size = 0x4, scoped, tag = 'scoped memory for tpu_custom_call.1']
    #allocation7 [shape = 'u8[16384]{0}', space=vmem, size = 0x4000, scoped, tag = 'output window, operand 0, single buffered']
    %7 = vsyncpa [#allocation3], 0
    %8 = vsyncpa [#allocation6], 0
    %9 = vsyncpa [#allocation4], 0
    // Predicated region
    $region2: #{tpu_custom_call.1} parent=1 // pred_check
      _
    $region3: #{tpu_custom_call.1} parent=1 // pred_check_branch
      %11 = sbr.rel (0) target = $region5
    $region4: #{tpu_custom_call.1} parent=1 // pred_region
      %s13 = ssub.s32 256, 256
      %14 = vsyncadd [#allocation3], %s13
      %s15 = sshll.u32 [#allocation2], 4
      %s16 = int_to_ptr.vmem [resolvable:$true] %s15
      %21 = dma.hbm_to_vmem [thread:$0]  %s0, 256, %s16, [#allocation3], 128, 128, 8
    $region5: #{tpu_custom_call.1} parent=1 // pred_fallthru
      _
    // Predicated region
    $region6: #{tpu_custom_call.1} parent=1 // pred_check
      _
    $region7: #{tpu_custom_call.1} parent=1 // pred_check_branch
      %23 = sbr.rel (0) target = $region9
    $region8: #{tpu_custom_call.1} parent=1 // pred_region
      %s25 = ssub.s32 1024, 1024
      %26 = vsyncadd [#allocation6], %s25
      %s27 = sshll.u32 [#allocation5], 4
      %s28 = int_to_ptr.vmem [resolvable:$true] %s27
      %33 = dma.hbm_to_vmem [thread:$0]  %s1, 1024, %s28, [#allocation6], 256, 256, 16
    $region9: #{tpu_custom_call.1} parent=1 // pred_fallthru
      _
    // Predicated region
    $region10: #{tpu_custom_call.1} parent=1 // pred_check
      _
    $region11: #{tpu_custom_call.1} parent=1 // pred_check_branch
      %35 = sbr.rel (0) target = $region13
    $region12: #{tpu_custom_call.1} parent=1 // pred_region
      %36 = dma.done [#allocation3], 256
    $region13: #{tpu_custom_call.1} parent=1 // pred_fallthru
      _
    // Predicated region
    $region14: #{tpu_custom_call.1} parent=1 // pred_check
      _
    $region15: #{tpu_custom_call.1} parent=1 // pred_check_branch
      %38 = sbr.rel (0) target = $region17
    $region16: #{tpu_custom_call.1} parent=1 // pred_region
      %39 = dma.done [#allocation6], 1024
    $region17: #{tpu_custom_call.1} parent=1 // pred_fallthru
      _
    %v40 = vld [vmem:[#allocation2] sm:$0xff]
    %v41 = vld [vmem:[#allocation2 + $0x8] sm:$0xff]
    %v42 = vld [vmem:[#allocation5] sm:$0xff]
    %v43 = vld [vmem:[#allocation5 + $0x8] sm:$0xff]
    %v44 = vld [vmem:[#allocation5 + $0x10] sm:$0xff]
    %v45 = vld [vmem:[#allocation5 + $0x18] sm:$0xff]
    %v46 = vld [vmem:[#allocation5 + $0x20] sm:$0xff]
    %v47 = vld [vmem:[#allocation5 + $0x28] sm:$0xff]
    %v48 = vld [vmem:[#allocation5 + $0x30] sm:$0xff]
    %v49 = vld [vmem:[#allocation5 + $0x38] sm:$0xff]
    %vm50 = vcmask 261120
    %v52 = vsel %vm50, %v40, 0
    %v55 = vsel %vm50, %v41, 0
    %57 = vmatprep.subr.mxu0 %v43
    %58 = vmatpush1.msra.mxu0 %v42
    %59 = vmatprep.subr.mxu0 %v45
    %60 = vmatpush1.msra.mxu0 %v44
    %61 = vmatprep.subr.mxu0 %v47
    %62 = vmatpush1.msra.mxu0 %v46
    %63 = vmatprep.subr.mxu0 %v49
    %64 = vmatpush1.msra.mxu0 %v48
    %65 = vmatprep.subr.mxu0 0.0
    %66 = vmatpush1.msra.mxu0 0.0
    %67 = vmatprep.subr.mxu0 0.0
    %68 = vmatpush1.msra.mxu0 0.0
    %69 = vmatprep.subr.mxu0 0.0
    %70 = vmatpush1.msra.mxu0 0.0
    %71 = vmatprep.subr.mxu0 0.0
    %72 = vmatpush1.msra.mxu0 0.0
    %73 = vmatprep.subr.mxu0 0.0
    %74 = vmatpush1.msra.mxu0 0.0
    %75 = vmatprep.subr.mxu0 0.0
    %76 = vmatpush1.msra.mxu0 0.0
    %77 = vmatprep.subr.mxu0 0.0
    %78 = vmatpush1.msra.mxu0 0.0
    %79 = vmatprep.subr.mxu0 0.0
    %80 = vmatpush1.msra.mxu0 0.0
    %81 = vmatprep.subr.mxu0 0.0
    %82 = vmatpush1.msra.mxu0 0.0
    %83 = vmatprep.subr.mxu0 0.0
    %84 = vmatpush1.msra.mxu0 0.0
    %85 = vmatprep.subr.mxu0 0.0
    %86 = vmatpush1.msra.mxu0 0.0
    %87 = vmatprep.subr.mxu0 0.0
    %88 = vmatpush1.msra.mxu0 0.0
    %89 = vmatprep.subr.mxu0 0.0
    %90 = vmatpush1.msra.mxu0 0.0
    %91 = vmatprep.subr.mxu0 0.0
    %92 = vmatpush1.msra.mxu0 0.0
    %93 = vmatprep.subr.mxu0 0.0
    %94 = vmatpush1.msra.mxu0 0.0
    %95 = vmatprep.subr.mxu0 0.0
    %96 = vmatpush1.msra.mxu0 0.0
    %97 = vmatprep.subr.mxu0 0.0
    %98 = vmatpush1.msra.mxu0 0.0
    %99 = vmatprep.subr.mxu0 0.0
    %100 = vmatpush1.msra.mxu0 0.0
    %101 = vmatprep.subr.mxu0 0.0
    %102 = vmatpush1.msra.mxu0 0.0
    %103 = vmatprep.subr.mxu0 0.0
    %104 = vmatpush1.msra.mxu0 0.0
    %105 = vmatprep.subr.mxu0 0.0
    %106 = vmatpush1.msra.mxu0 0.0
    %107 = vmatprep.subr.mxu0 0.0
    %108 = vmatpush1.msra.mxu0 0.0
    %109 = vmatprep.subr.mxu0 0.0
    %110 = vmatpush1.msra.mxu0 0.0
    %111 = vmatprep.subr.mxu0 0.0
    %112 = vmatpush1.msra.mxu0 0.0
    %113 = vmatprep.subr.mxu0 0.0
    %114 = vmatpush1.msra.mxu0 0.0
    %115 = vmatprep.subr.mxu0 0.0
    %116 = vmatpush1.msra.mxu0 0.0
    %117 = vmatprep.subr.mxu0 0.0
    %118 = vmatpush1.msra.mxu0 0.0
    %119 = vmatprep.subr.mxu0 0.0
    %120 = vmatpush1.msra.mxu0 0.0
    %121 = vmatprep.mubr.f32.mxu0 0.0
    %122 = vmatmul.mubr.f32.gmra.mrb[0].mxu0 %v52
    %v123 = vpop.f32.mrb[0].mxu0
    %v124 = vadd.f32 0.0, %v123
    %v125 = vpop.f32.mrb[0].mxu0
    %v126 = vadd.f32 0.0, %v125
    %127 = vmatprep.mubr.f32.mxu0 0.0
    %128 = vmatmul.mubr.f32.gmra.mrb[0].mxu0 %v55
    %v129 = vpop.f32.mrb[0].mxu0
    %v130 = vadd.f32 0.0, %v129
    %v131 = vpop.f32.mrb[0].mxu0
    %v132 = vadd.f32 0.0, %v131
    %133 = vdwg.mxu0
    %134 = vst [vmem:[#allocation7] sm:$0xff] %v124
    %135 = vst [vmem:[#allocation7 + $0x8] sm:$0xff] %v126
    %136 = vst [vmem:[#allocation7 + $0x10] sm:$0xff] %v130
    %137 = vst [vmem:[#allocation7 + $0x18] sm:$0xff] %v132
    // Predicated region
    $region18: #{tpu_custom_call.1} parent=1 // pred_check
      _
    $region19: #{tpu_custom_call.1} parent=1 // pred_check_branch
      %139 = sbr.rel (0) target = $region21
    $region20: #{tpu_custom_call.1} parent=1 // pred_region
      %s141 = ssub.s32 512, 512
      %142 = vsyncadd [#allocation4], %s141
      %s143 = sshll.u32 [#allocation7], 4
      %s144 = int_to_ptr.vmem [resolvable:$true] %s143
      %149 = dma.vmem_to_hbm [thread:$0]  %s144, 512, %s2, [#allocation4], 256, 256, 16
    $region21: #{tpu_custom_call.1} parent=1 // pred_fallthru
      _
    // Predicated region
    $region22: #{tpu_custom_call.1} parent=1 // pred_check
      _
    $region23: #{tpu_custom_call.1} parent=1 // pred_check_branch
      %151 = sbr.rel (0) target = $region25
    $region24: #{tpu_custom_call.1} parent=1 // pred_region
      %152 = dma.done [#allocation4], 512
    $region25: #{tpu_custom_call.1} parent=1 // pred_fallthru
      _
    %153 = vsyncpa [#allocation3], 1
    %154 = vsyncpa [#allocation6], 1
    %155 = vsyncpa [#allocation4], 1

</llo_original>
